<compile_context>
chip_gen: v7x
topology: tpu7x:2x2x1
jax: 0.10.0
libtpu: 0.0.40
codegen_flags: <defaults>
</compile_context>

<pallas_src>
import jax
import jax.numpy as jnp
from jax import lax
from jax.experimental import pallas as pl
from jax.experimental.pallas import tpu as pltpu

SUB = 8                  # sublanes per f32 vreg (accumulator rows)
LANES = 128              # lanes per vreg
ROW_GRAIN = 32           # row granularity: satisfies f32(8)/bf16(16)/int8(32)
MAX_TILE_ROWS = 2048     # 2048x128 f32 = 1 MiB per input block
MAX_INLINE_CLASSES = 4   # <=4 classes: in-kernel select chain for weights


def _round_up(x, m):
    return ((x + m - 1) // m) * m


def _make_kernel(*, n_classes, loss_type, class_w, tile_rows, tail_index,
                 tail_valid, stream_w):
    """Build the kernel body with all size/class parameters baked in."""
    tile_elems = tile_rows * LANES
    needs_tail_mask = tail_valid < tile_elems

    def kernel(*refs):
        if stream_w:
            p_ref, t_ref, w_ref, out_ref = refs
        else:
            p_ref, t_ref, out_ref = refs
            w_ref = None

        i = pl.program_id(0)

        @pl.when(i == 0)
        def _init():
            out_ref[...] = jnp.zeros_like(out_ref)

        def contrib():
            p = p_ref[...].astype(jnp.float32)
            t = t_ref[...].astype(jnp.float32)

            # Per-sample class weight w = class_w[target].
            if stream_w:
                w = w_ref[...]
            elif n_classes == 2:
                cw0, cw1 = class_w
                w = cw0 + t * (cw1 - cw0)            # exact for t in {0,1}
            else:
                w = jnp.full_like(p, jnp.float32(class_w[0]))
                for cls in range(1, n_classes):
                    w = jnp.where(t == jnp.float32(cls),
                                  jnp.float32(class_w[cls]), w)

            if loss_type == "cross-entropy":
                if n_classes == 2:
                    # binary 0/1 targets -> one log per element
                    per = -jnp.log(jnp.where(t >= 0.5, p, 1.0 - p))
                else:
                    per = -(t * jnp.log(p) + (1.0 - t) * jnp.log(1.0 - p))
            elif loss_type == "squared":
                d = p - t
                per = d * d
            else:
                # TODO(synk): 'focal' loss_type not implemented in the kernel.
                raise NotImplementedError(loss_type)
            return w * per

        def accumulate(c):
            # (tile_rows, 128) -> (8, 128) with plain vreg adds (free reshape,
            # no cross-lane traffic); the single cross-lane reduce happens
            # once, in the wrapper, over the tiny partial-sum block.
            folded = jnp.sum(c.reshape(tile_rows // SUB, SUB, LANES), axis=0)
            out_ref[...] += folded

        if not needs_tail_mask:
            accumulate(contrib())
        else:
            @pl.when(i != tail_index)
            def _interior():              # unmasked fast path
                accumulate(contrib())

            @pl.when(i == tail_index)
            def _tail():                  # mask lane pad / partial-block junk
                r = lax.broadcasted_iota(jnp.int32, (tile_rows, LANES), 0)
                l = lax.broadcasted_iota(jnp.int32, (tile_rows, LANES), 1)
                valid = (r * LANES + l) < tail_valid
                accumulate(jnp.where(valid, contrib(), jnp.float32(0.0)))

    return kernel


def class_balanced_loss(inp, target, num_of_label_list, beta=0.5,
                        loss_type="cross-entropy"):
    if loss_type not in ("cross-entropy", "squared"):
        # TODO(synk): 'focal' loss_type not implemented.
        raise NotImplementedError(loss_type)

    n_classes = len(num_of_label_list)

    # Effective-number class weights: static Python constants baked into the
    # kernel (no SMEM traffic, no per-element broadcast from memory).
    eff = [1.0 - float(beta) ** float(nc) for nc in num_of_label_list]
    cw = [(1.0 - float(beta)) / e for e in eff]
    s = sum(cw)
    class_w = tuple(c / s for c in cw)

    # Probabilities: stream in the caller's dtype and upcast in-kernel.
    p = jnp.asarray(inp)
    if p.dtype not in (jnp.float32, jnp.bfloat16, jnp.float16):
        p = p.astype(jnp.float32)
    p = p.reshape(-1)

    # Targets are integer class indices: stream as bf16 (2 B/elem) and upcast
    # in-kernel.  Exact for small integer labels.
    t = jnp.asarray(target).reshape(-1).astype(jnp.bfloat16)

    n = int(p.shape[0])

    # Minimal lane padding (<=127 elements; none when n % 128 == 0).  Tiny
    # inputs are bumped to one 32-row packing-aligned block (negligible copy).
    padded = _round_up(n, LANES)
    rows = padded // LANES
    if rows < ROW_GRAIN:
        rows = ROW_GRAIN
        padded = rows * LANES
    pad = padded - n
    if pad:
        p = jnp.pad(p, (0, pad))
        t = jnp.pad(t, (0, pad))
    p2 = p.reshape(rows, LANES)
    t2 = t.reshape(rows, LANES)

    # Large row tiles (1 MiB f32 block, double buffered) amortize per-step
    # overhead; 32-row granularity keeps f32/bf16 packing happy.
    tile_rows = min(MAX_TILE_ROWS, (rows // ROW_GRAIN) * ROW_GRAIN)
    num_tiles = (rows + tile_rows - 1) // tile_rows
    tail_index = num_tiles - 1
    tail_valid = n - tail_index * tile_rows * LANES

    stream_w = n_classes > MAX_INLINE_CLASSES
    data_spec = pl.BlockSpec((tile_rows, LANES), lambda i: (i, 0))
    in_specs = [data_spec, data_spec]
    args = [p2, t2]
    if stream_w:
        # Many classes: O(1) in-kernel work — gather per-sample weight once
        # in the wrapper and stream it.
        cw_arr = jnp.asarray(class_w, jnp.float32)
        w2 = cw_arr[t.astype(jnp.int32)].reshape(rows, LANES)
        in_specs.append(data_spec)
        args.append(w2)

    kernel = _make_kernel(n_classes=n_classes, loss_type=loss_type,
                          class_w=class_w, tile_rows=tile_rows,
                          tail_index=tail_index, tail_valid=tail_valid,
                          stream_w=stream_w)

    partial = pl.pallas_call(
        kernel,
        out_shape=jax.ShapeDtypeStruct((SUB, LANES), jnp.float32),
        grid=(num_tiles,),
        in_specs=in_specs,
        out_specs=pl.BlockSpec((SUB, LANES), lambda i: (0, 0)),
        compiler_params=pltpu.CompilerParams(
            dimension_semantics=("arbitrary",)),
    )(*args)

    # Single cross-lane reduce over the tiny (8,128) partial sum + mean.
    return jnp.sum(partial) / jnp.float32(n)


def _reference(inp, target, num_of_label_list, beta, loss_type):
    """Pure-JAX mirror of the torch ClassBalancedLoss.forward."""
    p = jnp.asarray(inp, jnp.float32).reshape(-1)
    t = jnp.asarray(target, jnp.float32).reshape(-1)
    n_labels = jnp.asarray(num_of_label_list, jnp.float32)
    eff = 1.0 - jnp.power(jnp.float32(beta), n_labels)
    cw = (1.0 - beta) / eff
    cw = cw / jnp.sum(cw)
    one_hot = jax.nn.one_hot(t.astype(jnp.int32), len(num_of_label_list))
    w = jnp.sum(one_hot * cw[None, :], axis=1)
    if loss_type == "cross-entropy":
        per = -(t * jnp.log(p) + (1.0 - t) * jnp.log(1.0 - p))
    else:  # squared
        per = (p - t) ** 2
    return jnp.mean(w * per)


if __name__ == "__main__":
    key = jax.random.PRNGKey(0)
    keys = jax.random.split(key, 8)

    # Binary classification, module-like 4-D input (2, 4, 16, 16).
    x1 = jax.random.uniform(keys[0], (2, 4, 16, 16), jnp.float32,
                            minval=0.05, maxval=0.95)
    y1 = jax.random.bernoulli(keys[1], 0.7, (2, 4, 16, 16)).astype(jnp.float32)

    # Odd flat size (exercises lane padding + tail masking).
    x2 = jax.random.uniform(keys[2], (2000,), jnp.float32,
                            minval=0.05, maxval=0.95)
    y2 = jax.random.bernoulli(keys[3], 0.3, (2000,)).astype(jnp.float32)

    # 3-class labels (exercises the in-kernel weight select chain).
    x3 = jax.random.uniform(keys[4], (300,), jnp.float32,
                            minval=0.05, maxval=0.95)
    y3 = jax.random.randint(keys[5], (300,), 0, 3).astype(jnp.float32)

    # Larger flat size: multi-tile grid + partial (packing-aligned) tail tile.
    n_big = 2 * MAX_TILE_ROWS * LANES + 32 * LANES - 50
    x4 = jax.random.uniform(keys[6], (n_big,), jnp.float32,
                            minval=0.05, maxval=0.95)
    y4 = jax.random.bernoulli(keys[7], 0.5, (n_big,)).astype(jnp.float32)

    cases = [
        (x1, y1, [5, 500], 0.9),
        (x2, y2, [5, 500], 0.9),
        (x3, y3, [5, 50, 500], 0.9),
        (x4, y4, [5, 500], 0.9),
    ]

    ok = True
    for x, y, labels, beta in cases:
        for lt in ("cross-entropy", "squared"):
            out = jax.block_until_ready(
                class_balanced_loss(x, y, labels, beta=beta, loss_type=lt))
            ref = jax.block_until_ready(_reference(x, y, labels, beta, lt))
            ok = ok and bool(jnp.allclose(out, ref, rtol=1e-4, atol=1e-6))

    print("KERNEL_OK" if ok else "MISMATCH")
</pallas_src>

<mosaic_0001>
module attributes {stable_mosaic.version = 11 : i64} {
  func.func @kernel(%arg0: i32, %arg1: memref<32x128xf32, #tpu.memory_space<vmem>>, %arg2: memref<32x128xbf16, #tpu.memory_space<vmem>>, %arg3: memref<8x128xf32, #tpu.memory_space<vmem>>) attributes {dimension_semantics = [#tpu.dimension_semantics<arbitrary>], iteration_bounds = array<i64: 1>, scalar_prefetch = 0 : i64, scratch_operands = 0 : i64, tpu.core_type = #tpu.core_type<tc>, window_params = [{transform_indices = @transform_0, window_bounds = array<i64: 32, 128>}, {transform_indices = @transform_1, window_bounds = array<i64: 32, 128>}, {pipeline_mode = #tpu.pipeline_mode<synchronous>, transform_indices = @transform_2, window_bounds = array<i64: 8, 128>}]} {
    %c0_i32 = arith.constant 0 : i32
    %0 = arith.cmpi eq, %arg0, %c0_i32 : i32
    %1 = arith.extui %0 : i1 to i32
    %c0_i32_0 = arith.constant 0 : i32
    %2 = arith.cmpi ne, %1, %c0_i32_0 : i32
    scf.if %2 {
      %cst = arith.constant 0.000000e+00 : f32
      %9 = vector.broadcast %cst : f32 to vector<8x128xf32>
      %c0 = arith.constant 0 : index
      %c0_5 = arith.constant 0 : index
      %10 = vector.load %arg3[%c0, %c0_5] : memref<8x128xf32, #tpu.memory_space<vmem>>, vector<8x128xf32>
      tpu.vector_store %arg3[%c0, %c0_5], %9 {strides = array<i32>} : memref<8x128xf32, #tpu.memory_space<vmem>>, vector<8x128xf32>,
    } else {
    }
    %c0_i32_1 = arith.constant 0 : i32
    %3 = arith.cmpi ne, %arg0, %c0_i32_1 : i32
    %4 = arith.extui %3 : i1 to i32
    %c0_i32_2 = arith.constant 0 : i32
    %5 = arith.cmpi ne, %4, %c0_i32_2 : i32
    scf.if %5 {
      %c0 = arith.constant 0 : index
      %c0_5 = arith.constant 0 : index
      %9 = vector.load %arg1[%c0, %c0_5] : memref<32x128xf32, #tpu.memory_space<vmem>>, vector<32x128xf32>
      %c0_6 = arith.constant 0 : index
      %c0_7 = arith.constant 0 : index
      %10 = vector.load %arg2[%c0_6, %c0_7] : memref<32x128xbf16, #tpu.memory_space<vmem>>, vector<32x128xbf16>
      %11 = arith.extf %10 : vector<32x128xbf16> to vector<32x128xf32>
      %cst = arith.constant -0.418932825 : f32
      %12 = vector.broadcast %cst : f32 to vector<32x128xf32>
      %13 = arith.mulf %11, %12 : vector<32x128xf32>
      %cst_8 = arith.constant 0.709466397 : f32
      %14 = vector.broadcast %cst_8 : f32 to vector<32x128xf32>
      %15 = arith.addf %14, %13 : vector<32x128xf32>
      %cst_9 = arith.constant 5.000000e-01 : f32
      %16 = vector.broadcast %cst_9 : f32 to vector<32x128xf32>
      %17 = arith.cmpf oge, %11, %16 : vector<32x128xf32>
      %cst_10 = arith.constant 1.000000e+00 : f32
      %18 = vector.broadcast %cst_10 : f32 to vector<32x128xf32>
      %19 = arith.subf %18, %9 : vector<32x128xf32>
      %20 = arith.select %17, %9, %19 : vector<32x128xi1>, vector<32x128xf32>
      %21 = math.log %20 : vector<32x128xf32>
      %cst_11 = arith.constant 0.000000e+00 : f32
      %22 = vector.broadcast %cst_11 : f32 to vector<32x128xf32>
      %23 = arith.subf %22, %21 : vector<32x128xf32>
      %24 = arith.mulf %15, %23 : vector<32x128xf32>
      %25 = vector.shape_cast %24 : vector<32x128xf32> to vector<4x8x128xf32>
      %cst_12 = arith.constant dense<0.000000e+00> : vector<8x128xf32>
      %26 = vector.multi_reduction <add>, %25, %cst_12 [0] : vector<4x8x128xf32> to vector<8x128xf32>
      %c0_13 = arith.constant 0 : index
      %c0_14 = arith.constant 0 : index
      %27 = vector.load %arg3[%c0_13, %c0_14] : memref<8x128xf32, #tpu.memory_space<vmem>>, vector<8x128xf32>
      %28 = arith.addf %27, %26 : vector<8x128xf32>
      %c0_15 = arith.constant 0 : index
      %c0_16 = arith.constant 0 : index
      %29 = vector.load %arg3[%c0_15, %c0_16] : memref<8x128xf32, #tpu.memory_space<vmem>>, vector<8x128xf32>
      tpu.vector_store %arg3[%c0_15, %c0_16], %28 {strides = array<i32>} : memref<8x128xf32, #tpu.memory_space<vmem>>, vector<8x128xf32>,
    } else {
    }
    %c0_i32_3 = arith.constant 0 : i32
    %6 = arith.cmpi eq, %arg0, %c0_i32_3 : i32
    %7 = arith.extui %6 : i1 to i32
    %c0_i32_4 = arith.constant 0 : i32
    %8 = arith.cmpi ne, %7, %c0_i32_4 : i32
    scf.if %8 {
      %9 = tpu.iota {dimensions = array<i32: 0>} : vector<32x128xi32>
      %10 = tpu.iota {dimensions = array<i32: 1>} : vector<32x128xi32>
      %c128_i32 = arith.constant 128 : i32
      %11 = vector.broadcast %c128_i32 : i32 to vector<32x128xi32>
      %12 = arith.muli %9, %11 : vector<32x128xi32>
      %13 = arith.addi %12, %10 : vector<32x128xi32>
      %c2048_i32 = arith.constant 2048 : i32
      %14 = vector.broadcast %c2048_i32 : i32 to vector<32x128xi32>
      %15 = arith.cmpi slt, %13, %14 : vector<32x128xi32>
      %c0 = arith.constant 0 : index
      %c0_5 = arith.constant 0 : index
      %16 = vector.load %arg1[%c0, %c0_5] : memref<32x128xf32, #tpu.memory_space<vmem>>, vector<32x128xf32>
      %c0_6 = arith.constant 0 : index
      %c0_7 = arith.constant 0 : index
      %17 = vector.load %arg2[%c0_6, %c0_7] : memref<32x128xbf16, #tpu.memory_space<vmem>>, vector<32x128xbf16>
      %18 = arith.extf %17 : vector<32x128xbf16> to vector<32x128xf32>
      %cst = arith.constant -0.418932825 : f32
      %19 = vector.broadcast %cst : f32 to vector<32x128xf32>
      %20 = arith.mulf %18, %19 : vector<32x128xf32>
      %cst_8 = arith.constant 0.709466397 : f32
      %21 = vector.broadcast %cst_8 : f32 to vector<32x128xf32>
      %22 = arith.addf %21, %20 : vector<32x128xf32>
      %cst_9 = arith.constant 5.000000e-01 : f32
      %23 = vector.broadcast %cst_9 : f32 to vector<32x128xf32>
      %24 = arith.cmpf oge, %18, %23 : vector<32x128xf32>
      %cst_10 = arith.constant 1.000000e+00 : f32
      %25 = vector.broadcast %cst_10 : f32 to vector<32x128xf32>
      %26 = arith.subf %25, %16 : vector<32x128xf32>
      %27 = arith.select %24, %16, %26 : vector<32x128xi1>, vector<32x128xf32>
      %28 = math.log %27 : vector<32x128xf32>
      %cst_11 = arith.constant 0.000000e+00 : f32
      %29 = vector.broadcast %cst_11 : f32 to vector<32x128xf32>
      %30 = arith.subf %29, %28 : vector<32x128xf32>
      %31 = arith.mulf %22, %30 : vector<32x128xf32>
      %cst_12 = arith.constant 0.000000e+00 : f32
      %32 = vector.broadcast %cst_12 : f32 to vector<32x128xf32>
      %33 = arith.select %15, %31, %32 : vector<32x128xi1>, vector<32x128xf32>
      %34 = vector.shape_cast %33 : vector<32x128xf32> to vector<4x8x128xf32>
      %cst_13 = arith.constant dense<0.000000e+00> : vector<8x128xf32>
      %35 = vector.multi_reduction <add>, %34, %cst_13 [0] : vector<4x8x128xf32> to vector<8x128xf32>
      %c0_14 = arith.constant 0 : index
      %c0_15 = arith.constant 0 : index
      %36 = vector.load %arg3[%c0_14, %c0_15] : memref<8x128xf32, #tpu.memory_space<vmem>>, vector<8x128xf32>
      %37 = arith.addf %36, %35 : vector<8x128xf32>
      %c0_16 = arith.constant 0 : index
      %c0_17 = arith.constant 0 : index
      %38 = vector.load %arg3[%c0_16, %c0_17] : memref<8x128xf32, #tpu.memory_space<vmem>>, vector<8x128xf32>
      tpu.vector_store %arg3[%c0_16, %c0_17], %37 {strides = array<i32>} : memref<8x128xf32, #tpu.memory_space<vmem>>, vector<8x128xf32>,
    } else {
    }
    return
  }
  func.func @transform_0(%arg0: i32) -> (i32, i32) {
    %c0_i32 = arith.constant 0 : i32
    %c0_i32_0 = arith.constant 0 : i32
    return %arg0, %c0_i32 : i32, i32
  }
  func.func @transform_1(%arg0: i32) -> (i32, i32) {
    %c0_i32 = arith.constant 0 : i32
    %c0_i32_0 = arith.constant 0 : i32
    return %arg0, %c0_i32 : i32, i32
  }
  func.func @transform_2(%arg0: i32) -> (i32, i32) {
    %c0_i32 = arith.constant 0 : i32
    %c0_i32_0 = arith.constant 0 : i32
    %c0_i32_1 = arith.constant 0 : i32
    return %c0_i32, %c0_i32_0 : i32, i32
  }
}

</mosaic_0001>

<llo_original>
// kernel: tpu_custom_call.1
$region0: #{tpu_custom_call.1}
  #allocation0 [shape = 'u32[]', space=smem, size = 0x4, offset = 0x4, fixed_abs, tag = 'smem constant byte address 0x4 - core index']
  #allocation1 [shape = 'u32[144,128]{1,0:T(1,128)}', space=vmem, size = 0x12000, scoped, tag = 'internal scratch']
  %s0 = inlined_call_operand.hbm [shape: f32[32,128], index: 0, kind: input, shape index: {}]
  %s1 = inlined_call_operand.hbm [shape: bf16[32,128], index: 1, kind: input, shape index: {}]
  %s2 = inlined_call_operand.hbm [shape: f32[8,128], index: 2, kind: output, shape index: {}]
  %s3 = sld [smem:[#allocation0]]
  $region38: #{tpu_custom_call.1} parent=0
    _
  %s5 = ssub.s32 1, %s3
  %s6 = scalar_select 0, %s5, %s3
  $region1: #{tpu_custom_call.1} parent=0
    #allocation2 [shape = 'u8[16384]{0}', space=vmem, size = 0x4000, scoped, tag = 'input window, operand 0, single buffered']
    #allocation3 [shape = 's32[1]{0}', space=sflag, size = 0x4, scoped, tag = 'scoped memory for tpu_custom_call.1']
    #allocation4 [shape = 's32[1]{0}', space=sflag, size = 0x4, scoped, tag = 'scoped memory for tpu_custom_call.1']
    #allocation5 [shape = 'u8[8192]{0}', space=vmem, size = 0x2000, scoped, tag = 'input window, operand 1, single buffered']
    #allocation6 [shape = 's32[1]{0}', space=sflag, size = 0x4, scoped, tag = 'scoped memory for tpu_custom_call.1']
    #allocation7 [shape = 'u8[4096]{0}', space=vmem, size = 0x1000, scoped, tag = 'output window, operand 0, single buffered']
    %7 = vsyncpa [#allocation3], 0
    %8 = vsyncpa [#allocation6], 0
    %9 = vsyncpa [#allocation4], 0
    // Predicated region
    $region2: #{tpu_custom_call.1} parent=1 // pred_check
      _
    $region3: #{tpu_custom_call.1} parent=1 // pred_check_branch
      %11 = sbr.rel (0) target = $region5
    $region4: #{tpu_custom_call.1} parent=1 // pred_region
      %s13 = ssub.s32 512, 512
      %14 = vsyncadd [#allocation3], %s13
      %s15 = sshll.u32 [#allocation2], 4
      %s16 = int_to_ptr.vmem [resolvable:$true] %s15
      %21 = dma.hbm_to_vmem [thread:$0]  %s0, 512, %s16, [#allocation3], 128, 128, 8
    $region5: #{tpu_custom_call.1} parent=1 // pred_fallthru
      _
    // Predicated region
    $region6: #{tpu_custom_call.1} parent=1 // pred_check
      _
    $region7: #{tpu_custom_call.1} parent=1 // pred_check_branch
      %23 = sbr.rel (0) target = $region9
    $region8: #{tpu_custom_call.1} parent=1 // pred_region
      %s25 = ssub.s32 256, 256
      %26 = vsyncadd [#allocation6], %s25
      %s27 = sshll.u32 [#allocation5], 4
      %s28 = int_to_ptr.vmem [resolvable:$true] %s27
      %33 = dma.hbm_to_vmem [thread:$0]  %s1, 256, %s28, [#allocation6], 64, 64, 4
    $region9: #{tpu_custom_call.1} parent=1 // pred_fallthru
      _
    // Predicated region
    $region10: #{tpu_custom_call.1} parent=1 // pred_check
      _
    $region11: #{tpu_custom_call.1} parent=1 // pred_check_branch
      %35 = sbr.rel (0) target = $region13
    $region12: #{tpu_custom_call.1} parent=1 // pred_region
      %36 = dma.done [#allocation3], 512
    $region13: #{tpu_custom_call.1} parent=1 // pred_fallthru
      _
    // Predicated region
    $region14: #{tpu_custom_call.1} parent=1 // pred_check
      _
    $region15: #{tpu_custom_call.1} parent=1 // pred_check_branch
      %38 = sbr.rel (0) target = $region17
    $region16: #{tpu_custom_call.1} parent=1 // pred_region
      %39 = dma.done [#allocation6], 256
    $region17: #{tpu_custom_call.1} parent=1 // pred_fallthru
      _
    %p40 = scmp.eq.s32.totalorder 0, 0
    // Predicated region
    $region18: #{tpu_custom_call.1} parent=1 // pred_check
      %p41 = pneg %p40
    $region19: #{tpu_custom_call.1} parent=1 // pred_check_branch
      %43 = sbr.rel (%p41) target = $region21
    $region20: #{tpu_custom_call.1} parent=1 // pred_region
      %44 = vst [vmem:[#allocation7] sm:$0xff] 0.0
    $region21: #{tpu_custom_call.1} parent=1 // pred_fallthru
      _
    %p45 = scmp.ne.s32.totalorder 0, 0
    // Predicated region
    $region22: #{tpu_custom_call.1} parent=1 // pred_check
      %p46 = pneg %p45
    $region23: #{tpu_custom_call.1} parent=1 // pred_check_branch
      %48 = sbr.rel (%p46) target = $region25
    $region24: #{tpu_custom_call.1} parent=1 // pred_region
      %v49 = vld [vmem:[#allocation2] sm:$0xff]
      %v50 = vld [vmem:[#allocation2 + $0x8] sm:$0xff]
      %v51 = vld [vmem:[#allocation2 + $0x10] sm:$0xff]
      %v52 = vld [vmem:[#allocation2 + $0x18] sm:$0xff]
      %v53 = vld [vmem:[#allocation5] sm:$0xf]
      %v54 = vld [vmem:[#allocation5 + $0x4] sm:$0xf]
      %v55 = vld [vmem:[#allocation5 + $0x8] sm:$0xf]
      %v56 = vld [vmem:[#allocation5 + $0xc] sm:$0xf]
      %v57 = vunpack.c.l.bf16 %v53
      %v58 = vunpack.c.l.bf16 %v54
      %v59 = vunpack.c.l.bf16 %v55
      %v60 = vunpack.c.l.bf16 %v56
      %v61 = vmul.f32 %v57, -0.41893283
      %v62 = vmul.f32 %v58, -0.41893283
      %v63 = vmul.f32 %v59, -0.41893283
      %v64 = vmul.f32 %v60, -0.41893283
      %v65 = vadd.f32 %v61, 0.7094664
      %v66 = vadd.f32 %v62, 0.7094664
      %v67 = vadd.f32 %v63, 0.7094664
      %v68 = vadd.f32 %v64, 0.7094664
      %vm69 = vcmp.ge.f32.partialorder %v57, 0.5
      %vm70 = vcmp.ge.f32.partialorder %v58, 0.5
      %vm71 = vcmp.ge.f32.partialorder %v59, 0.5
      %vm72 = vcmp.ge.f32.partialorder %v60, 0.5
      %v73 = vsub.f32 1.0, %v49
      %v74 = vsub.f32 1.0, %v50
      %v75 = vsub.f32 1.0, %v51
      %v76 = vsub.f32 1.0, %v52
      %v77 = vsel %vm69, %v49, %v73
      %v78 = vsel %vm70, %v50, %v74
      %v79 = vsel %vm71, %v51, %v75
      %v80 = vsel %vm72, %v52, %v76
      %v81 = vlog2.pop %v77
      %v82 = vmul.f32 %v81, 0.6931472
      %v83 = vlog2.pop %v78
      %v84 = vmul.f32 %v83, 0.6931472
      %v85 = vlog2.pop %v79
      %v86 = vmul.f32 %v85, 0.6931472
      %v87 = vlog2.pop %v80
      %v88 = vmul.f32 %v87, 0.6931472
      %v89 = vsub.f32 0.0, %v82
      %v90 = vsub.f32 0.0, %v84
      %v91 = vsub.f32 0.0, %v86
      %v92 = vsub.f32 0.0, %v88
      %v93 = vmul.f32 %v65, %v89
      %v94 = vmul.f32 %v66, %v90
      %v95 = vmul.f32 %v67, %v91
      %v96 = vmul.f32 %v68, %v92
      %v97 = vadd.f32 %v93, %v94
      %v98 = vadd.f32 %v97, %v95
      %v99 = vadd.f32 %v98, %v96
      %v100 = vld [vmem:[#allocation7] sm:$0xff]
      %v101 = vadd.f32 %v100, %v99
      %102 = vst [vmem:[#allocation7] sm:$0xff] %v101
    $region25: #{tpu_custom_call.1} parent=1 // pred_fallthru
      _
    // Predicated region
    $region26: #{tpu_custom_call.1} parent=1 // pred_check
      %p103 = pneg %p40
    $region27: #{tpu_custom_call.1} parent=1 // pred_check_branch
      %105 = sbr.rel (%p103) target = $region29
    $region28: #{tpu_custom_call.1} parent=1 // pred_region
      %v106 = vlaneseq
      %v107 = vshrl.u32 %v106, 7
      %v108 = vadd.s32 %v107, 8
      %v109 = vadd.s32 %v107, 16
      %v110 = vadd.s32 %v107, 24
      %v111 = vlaneseq
      %v112 = vand.u32 %v111, 127
      %v113 = vmul.u32 %v107, 128
      %v114 = vmul.u32 %v108, 128
      %v115 = vmul.u32 %v109, 128
      %v116 = vmul.u32 %v110, 128
      %v117 = vadd.s32 %v113, %v112
      %v118 = vadd.s32 %v114, %v112
      %v119 = vadd.s32 %v115, %v112
      %v120 = vadd.s32 %v116, %v112
      %vm121 = vcmp.lt.s32.totalorder %v117, 2048
      %vm122 = vcmp.lt.s32.totalorder %v118, 2048
      %vm123 = vcmp.lt.s32.totalorder %v119, 2048
      %vm124 = vcmp.lt.s32.totalorder %v120, 2048
      %v125 = vld [vmem:[#allocation2] sm:$0xff]
      %v126 = vld [vmem:[#allocation2 + $0x8] sm:$0xff]
      %v127 = vld [vmem:[#allocation2 + $0x10] sm:$0xff]
      %v128 = vld [vmem:[#allocation2 + $0x18] sm:$0xff]
      %v129 = vld [vmem:[#allocation5] sm:$0xf]
      %v130 = vld [vmem:[#allocation5 + $0x4] sm:$0xf]
      %v131 = vld [vmem:[#allocation5 + $0x8] sm:$0xf]
      %v132 = vld [vmem:[#allocation5 + $0xc] sm:$0xf]
      %v133 = vunpack.c.l.bf16 %v129
      %v134 = vunpack.c.l.bf16 %v130
      %v135 = vunpack.c.l.bf16 %v131
      %v136 = vunpack.c.l.bf16 %v132
      %v137 = vmul.f32 %v133, -0.41893283
      %v138 = vmul.f32 %v134, -0.41893283
      %v139 = vmul.f32 %v135, -0.41893283
      %v140 = vmul.f32 %v136, -0.41893283
      %v141 = vadd.f32 %v137, 0.7094664
      %v142 = vadd.f32 %v138, 0.7094664
      %v143 = vadd.f32 %v139, 0.7094664
      %v144 = vadd.f32 %v140, 0.7094664
      %vm145 = vcmp.ge.f32.partialorder %v133, 0.5
      %vm146 = vcmp.ge.f32.partialorder %v134, 0.5
      %vm147 = vcmp.ge.f32.partialorder %v135, 0.5
      %vm148 = vcmp.ge.f32.partialorder %v136, 0.5
      %v149 = vsub.f32 1.0, %v125
      %v150 = vsub.f32 1.0, %v126
      %v151 = vsub.f32 1.0, %v127
      %v152 = vsub.f32 1.0, %v128
      %v153 = vsel %vm145, %v125, %v149
      %v154 = vsel %vm146, %v126, %v150
      %v155 = vsel %vm147, %v127, %v151
      %v156 = vsel %vm148, %v128, %v152
      %v157 = vlog2.pop %v153
      %v158 = vmul.f32 %v157, 0.6931472
      %v159 = vlog2.pop %v154
      %v160 = vmul.f32 %v159, 0.6931472
      %v161 = vlog2.pop %v155
      %v162 = vmul.f32 %v161, 0.6931472
      %v163 = vlog2.pop %v156
      %v164 = vmul.f32 %v163, 0.6931472
      %v165 = vsub.f32 0.0, %v158
      %v166 = vsub.f32 0.0, %v160
      %v167 = vsub.f32 0.0, %v162
      %v168 = vsub.f32 0.0, %v164
      %v169 = vmul.f32 %v141, %v165
      %v170 = vmul.f32 %v142, %v166
      %v171 = vmul.f32 %v143, %v167
      %v172 = vmul.f32 %v144, %v168
      %v173 = vsel %vm121, %v169, 0.0
      %v174 = vsel %vm122, %v170, 0.0
      %v175 = vsel %vm123, %v171, 0.0
      %v176 = vsel %vm124, %v172, 0.0
      %v177 = vadd.f32 %v173, %v174
      %v178 = vadd.f32 %v177, %v175
      %v179 = vadd.f32 %v178, %v176
      %v180 = vld [vmem:[#allocation7] sm:$0xff]
      %v181 = vadd.f32 %v180, %v179
      %182 = vst [vmem:[#allocation7] sm:$0xff] %v181
    $region29: #{tpu_custom_call.1} parent=1 // pred_fallthru
      _
    // Predicated region
    $region30: #{tpu_custom_call.1} parent=1 // pred_check
      _
    $region31: #{tpu_custom_call.1} parent=1 // pred_check_branch
      %184 = sbr.rel (0) target = $region33
    $region32: #{tpu_custom_call.1} parent=1 // pred_region
      %s186 = ssub.s32 128, 128
      %187 = vsyncadd [#allocation4], %s186
      %s189 = sshll.u32 [#allocation7], 4
      %s190 = int_to_ptr.vmem [resolvable:$true] %s189
      %192 = dma.vmem_to_hbm [thread:$0]  %s190, 128, %s2, [#allocation4]
    $region33: #{tpu_custom_call.1} parent=1 // pred_fallthru
      _
    // Predicated region
    $region34: #{tpu_custom_call.1} parent=1 // pred_check
      _
    $region35: #{tpu_custom_call.1} parent=1 // pred_check_branch
      %194 = sbr.rel (0) target = $region37
    $region36: #{tpu_custom_call.1} parent=1 // pred_region
      %195 = dma.done [#allocation4], 128
    $region37: #{tpu_custom_call.1} parent=1 // pred_fallthru
      _
    %196 = vsyncpa [#allocation3], 1
    %197 = vsyncpa [#allocation6], 1
    %198 = vsyncpa [#allocation4], 1

</llo_original>
